<compile_context>
chip_gen: v6e
topology: v6e:2x2x1
jax: 0.10.0
libtpu: 0.0.40
codegen_flags: <defaults>
</compile_context>

<pallas_src>
import functools

import jax
import jax.numpy as jnp
from jax.experimental import pallas as pl
from jax.experimental.pallas import tpu as pltpu


def _conv_relu_block_kernel(x_ref, w1_ref, b1_ref, w2_ref, b2_ref, m_ref,
                            o_ref, p1_ref, p2_ref, *, W):
    # x_ref : (nb, Cin, H*W)      activations, spatial flattened on lanes
    # w1_ref: (Cmid, 9*Cin)       conv1 weights, K ordered (kh, kw, cin)
    # b1_ref: (Cmid, 1)
    # w2_ref: (Cout, 9*Cmid)
    # b2_ref: (Cout, 1)
    # m_ref : (9, H*W)            per-tap 0/1 border masks (f32)
    # o_ref : (nb, Cout, H*W)
    # p1_ref: (9*Cin, H*W)  VMEM  im2col patch matrix for conv1
    # p2_ref: (9*Cmid, H*W) VMEM  im2col patch matrix for conv2
    nb, Cin, HW = x_ref.shape
    Cmid = w1_ref.shape[0]

    def im2col(act, c, p_ref):
        # act: (c, HW) f32 value. Build P[t*c + i, p] = act[i, p + s_t] * mask_t
        # where s_t = (kh-1)*W + (kw-1). Every row of p_ref is overwritten, so
        # no zero-init is needed.
        for kh in range(3):
            for kw in range(3):
                t = kh * 3 + kw
                s = (kh - 1) * W + (kw - 1)
                if s == 0:
                    shifted = act
                else:
                    # np.roll semantics: out[p] = act[(p - shift) % HW]
                    shifted = pltpu.roll(act, (-s) % HW, 1)
                if t == 4:
                    blk = shifted                      # center tap: always valid
                else:
                    blk = shifted * m_ref[t:t + 1, :]  # zero out-of-image reads
                p_ref[t * c:(t + 1) * c, :] = blk

    # Hoist weight/bias loads out of the batch loop.
    w1 = w1_ref[...]
    b1 = b1_ref[...]
    w2 = w2_ref[...]
    b2 = b2_ref[...]

    for b in range(nb):
        x = x_ref[b].astype(jnp.float32)               # (Cin, HW)

        # ---- conv1 + ReLU : one (Cmid, 9*Cin) @ (9*Cin, HW) matmul --------
        im2col(x, Cin, p1_ref)
        y1 = jnp.dot(w1, p1_ref[...], preferred_element_type=jnp.float32)
        y1 = jnp.maximum(y1 + b1, 0.0)                 # (Cmid, HW)

        # ---- conv2 + ReLU : one (Cout, 9*Cmid) @ (9*Cmid, HW) matmul ------
        im2col(y1, Cmid, p2_ref)
        y2 = jnp.dot(w2, p2_ref[...], preferred_element_type=jnp.float32)
        y2 = jnp.maximum(y2 + b2, 0.0)                 # (Cout, HW)

        o_ref[b] = y2.astype(o_ref.dtype)


def _pick_batch_block(n):
    # Largest divisor of n that keeps >= 2 grid steps: amortizes the ~0.35us
    # per-step pipeline overhead while leaving work for both v7x TensorCores.
    if n <= 1:
        return 1
    for nb in range(n // 2, 0, -1):
        if n % nb == 0:
            return nb
    return 1


def conv_relu_block_2d(x_nchw, w1, b1, w2, b2, *, batch_block=None):
    """Fused conv(3x3,p=1)->relu->conv(3x3,p=1)->relu.

    x_nchw: [N, Cin, H, W]       (PyTorch layout)
    w1:     [Cmid, Cin, 3, 3]    (PyTorch OIHW)
    b1:     [Cmid]
    w2:     [Cout, Cmid, 3, 3]   (PyTorch OIHW)
    b2:     [Cout]
    returns [N, Cout, H, W]
    """
    N, Cin, H, W = x_nchw.shape
    Cmid = w1.shape[0]
    Cout = w2.shape[0]
    assert w2.shape[1] == Cmid, "conv2 input channels must match conv1 output"
    HW = H * W

    # Free contiguous reshape: NCHW -> (N, C, H*W). No transpose, no pad.
    x = x_nchw.reshape(N, Cin, HW).astype(jnp.float32)

    # Weights as (Cout, 9*Cin) with K ordered (kh, kw, cin) to match the
    # im2col row ordering built in the kernel.
    w1m = jnp.transpose(w1, (0, 2, 3, 1)).reshape(Cmid, 9 * Cin).astype(jnp.float32)
    w2m = jnp.transpose(w2, (0, 2, 3, 1)).reshape(Cout, 9 * Cmid).astype(jnp.float32)
    b1c = b1.reshape(Cmid, 1).astype(jnp.float32)
    b2c = b2.reshape(Cout, 1).astype(jnp.float32)

    # Per-tap validity masks over the flattened spatial axis (1.0 where the
    # 3x3 tap stays inside the image, 0.0 where it would read the zero pad).
    pos = jnp.arange(HW, dtype=jnp.int32)
    hh = pos // W
    ww = pos % W
    mask_rows = []
    for kh in range(3):
        for kw in range(3):
            dh, dw = kh - 1, kw - 1
            valid = ((hh + dh >= 0) & (hh + dh < H) &
                     (ww + dw >= 0) & (ww + dw < W))
            mask_rows.append(valid)
    masks = jnp.stack(mask_rows, axis=0).astype(jnp.float32)   # (9, HW)

    nb = _pick_batch_block(N) if batch_block is None else batch_block
    assert N % nb == 0
    grid = (N // nb,)

    kernel = functools.partial(_conv_relu_block_kernel, W=W)
    out = pl.pallas_call(
        kernel,
        out_shape=jax.ShapeDtypeStruct((N, Cout, HW), x_nchw.dtype),
        grid_spec=pltpu.PrefetchScalarGridSpec(
            num_scalar_prefetch=0,
            grid=grid,
            in_specs=[
                pl.BlockSpec((nb, Cin, HW), lambda n: (n, 0, 0)),
                pl.BlockSpec((Cmid, 9 * Cin), lambda n: (0, 0)),
                pl.BlockSpec((Cmid, 1), lambda n: (0, 0)),
                pl.BlockSpec((Cout, 9 * Cmid), lambda n: (0, 0)),
                pl.BlockSpec((Cout, 1), lambda n: (0, 0)),
                pl.BlockSpec((9, HW), lambda n: (0, 0)),
            ],
            out_specs=pl.BlockSpec((nb, Cout, HW), lambda n: (n, 0, 0)),
            scratch_shapes=[
                pltpu.VMEM((9 * Cin, HW), jnp.float32),
                pltpu.VMEM((9 * Cmid, HW), jnp.float32),
            ],
        ),
        compiler_params=pltpu.CompilerParams(
            dimension_semantics=("parallel",)),
    )(x, w1m, b1c, w2m, b2c, masks)

    # Free contiguous reshape back to NCHW.
    return out.reshape(N, Cout, H, W)


def _reference(x_nchw, w1, b1, w2, b2):
    """Pure-JAX reference (lax conv) in NCHW with OIHW weights."""
    dn = jax.lax.conv_dimension_numbers(x_nchw.shape, w1.shape,
                                        ("NCHW", "OIHW", "NCHW"))
    y = jax.lax.conv_general_dilated(x_nchw, w1, (1, 1), "SAME",
                                     dimension_numbers=dn)
    y = jnp.maximum(y + b1[None, :, None, None], 0.0)
    y = jax.lax.conv_general_dilated(y, w2, (1, 1), "SAME",
                                     dimension_numbers=dn)
    y = jnp.maximum(y + b2[None, :, None, None], 0.0)
    return y


if __name__ == "__main__":
    # conv2 takes `in_channels` inputs in the PyTorch module, so the forward
    # only works when in_channels == out_channels; pick C = 4.
    N, C, H, W = 2, 4, 16, 16
    key = jax.random.PRNGKey(0)
    kx, k1, kb1, k2, kb2 = jax.random.split(key, 5)

    fan_in = C * 3 * 3
    bound = 1.0 / (fan_in ** 0.5)
    x = jax.random.normal(kx, (N, C, H, W), dtype=jnp.float32)
    w1 = jax.random.uniform(k1, (C, C, 3, 3), jnp.float32, -bound, bound)
    b1 = jax.random.uniform(kb1, (C,), jnp.float32, -bound, bound)
    w2 = jax.random.uniform(k2, (C, C, 3, 3), jnp.float32, -bound, bound)
    b2 = jax.random.uniform(kb2, (C,), jnp.float32, -bound, bound)

    out = jax.jit(conv_relu_block_2d)(x, w1, b1, w2, b2)
    out = jax.block_until_ready(out)

    ref = _reference(x, w1, b1, w2, b2)
    assert out.shape == (N, C, H, W)
    assert jnp.allclose(out, ref, atol=1e-4, rtol=1e-4)
    print("KERNEL_OK")
</pallas_src>

<mosaic_0001>
module attributes {stable_mosaic.version = 11 : i64} {
  func.func @_conv_relu_block_kernel(%arg0: i32, %arg1: memref<1x4x256xf32, #tpu.memory_space<vmem>>, %arg2: memref<4x36xf32, #tpu.memory_space<vmem>>, %arg3: memref<4x1xf32, #tpu.memory_space<vmem>>, %arg4: memref<4x36xf32, #tpu.memory_space<vmem>>, %arg5: memref<4x1xf32, #tpu.memory_space<vmem>>, %arg6: memref<9x256xf32, #tpu.memory_space<vmem>>, %arg7: memref<1x4x256xf32, #tpu.memory_space<vmem>>, %arg8: memref<36x256xf32, #tpu.memory_space<vmem>>, %arg9: memref<36x256xf32, #tpu.memory_space<vmem>>) attributes {dimension_semantics = [#tpu.dimension_semantics<parallel>], iteration_bounds = array<i64: 2>, scalar_prefetch = 0 : i64, scratch_operands = 2 : i64, tpu.core_type = #tpu.core_type<tc>, window_params = [{transform_indices = @transform_0, window_bounds = array<i64: 1, 4, 256>}, {pipeline_mode = #tpu.pipeline_mode<synchronous>, transform_indices = @transform_1, window_bounds = array<i64: 4, 36>}, {pipeline_mode = #tpu.pipeline_mode<synchronous>, transform_indices = @transform_2, window_bounds = array<i64: 4, 1>}, {pipeline_mode = #tpu.pipeline_mode<synchronous>, transform_indices = @transform_3, window_bounds = array<i64: 4, 36>}, {pipeline_mode = #tpu.pipeline_mode<synchronous>, transform_indices = @transform_4, window_bounds = array<i64: 4, 1>}, {pipeline_mode = #tpu.pipeline_mode<synchronous>, transform_indices = @transform_5, window_bounds = array<i64: 9, 256>}, {transform_indices = @transform_6, window_bounds = array<i64: 1, 4, 256>}]} {
    %c0 = arith.constant 0 : index
    %c0_0 = arith.constant 0 : index
    %0 = vector.load %arg2[%c0, %c0_0] : memref<4x36xf32, #tpu.memory_space<vmem>>, vector<4x36xf32>
    %c0_1 = arith.constant 0 : index
    %c0_2 = arith.constant 0 : index
    %1 = vector.load %arg3[%c0_1, %c0_2] : memref<4x1xf32, #tpu.memory_space<vmem>>, vector<4x1xf32>
    %c0_3 = arith.constant 0 : index
    %c0_4 = arith.constant 0 : index
    %2 = vector.load %arg4[%c0_3, %c0_4] : memref<4x36xf32, #tpu.memory_space<vmem>>, vector<4x36xf32>
    %c0_5 = arith.constant 0 : index
    %c0_6 = arith.constant 0 : index
    %3 = vector.load %arg5[%c0_5, %c0_6] : memref<4x1xf32, #tpu.memory_space<vmem>>, vector<4x1xf32>
    %c0_7 = arith.constant 0 : index
    %c0_8 = arith.constant 0 : index
    %c0_9 = arith.constant 0 : index
    %4 = vector.load %arg1[%c0_7, %c0_8, %c0_9] : memref<1x4x256xf32, #tpu.memory_space<vmem>>, vector<1x4x256xf32>
    %5 = vector.shape_cast %4 : vector<1x4x256xf32> to vector<4x256xf32>
    %c17_i32 = arith.constant 17 : i32
    %6 = tpu.dynamic_rotate %5 by %c17_i32 dim 1 : vector<4x256xf32>, i32 -> vector<4x256xf32>
    %c0_10 = arith.constant 0 : index
    %c0_11 = arith.constant 0 : index
    %7 = vector.load %arg6[%c0_10, %c0_11] : memref<9x256xf32, #tpu.memory_space<vmem>>, vector<1x256xf32>
    %8 = vector.broadcast %7 : vector<1x256xf32> to vector<4x256xf32>
    %9 = arith.mulf %6, %8 : vector<4x256xf32>
    %c0_12 = arith.constant 0 : index
    %c0_13 = arith.constant 0 : index
    %10 = vector.load %arg8[%c0_12, %c0_13] : memref<36x256xf32, #tpu.memory_space<vmem>>, vector<4x256xf32>
    tpu.vector_store %arg8[%c0_12, %c0_13], %9 {strides = array<i32>} : memref<36x256xf32, #tpu.memory_space<vmem>>, vector<4x256xf32>,
    %c16_i32 = arith.constant 16 : i32
    %11 = tpu.dynamic_rotate %5 by %c16_i32 dim 1 : vector<4x256xf32>, i32 -> vector<4x256xf32>
    %c1 = arith.constant 1 : index
    %c0_14 = arith.constant 0 : index
    %12 = vector.load %arg6[%c1, %c0_14] : memref<9x256xf32, #tpu.memory_space<vmem>>, vector<1x256xf32>
    %13 = vector.broadcast %12 : vector<1x256xf32> to vector<4x256xf32>
    %14 = arith.mulf %11, %13 : vector<4x256xf32>
    %c4 = arith.constant 4 : index
    %c0_15 = arith.constant 0 : index
    %15 = vector.load %arg8[%c4, %c0_15] : memref<36x256xf32, #tpu.memory_space<vmem>>, vector<4x256xf32>
    tpu.vector_store %arg8[%c4, %c0_15], %14 {strides = array<i32>} : memref<36x256xf32, #tpu.memory_space<vmem>>, vector<4x256xf32>,
    %c15_i32 = arith.constant 15 : i32
    %16 = tpu.dynamic_rotate %5 by %c15_i32 dim 1 : vector<4x256xf32>, i32 -> vector<4x256xf32>
    %c2 = arith.constant 2 : index
    %c0_16 = arith.constant 0 : index
    %17 = vector.load %arg6[%c2, %c0_16] : memref<9x256xf32, #tpu.memory_space<vmem>>, vector<1x256xf32>
    %18 = vector.broadcast %17 : vector<1x256xf32> to vector<4x256xf32>
    %19 = arith.mulf %16, %18 : vector<4x256xf32>
    %c8 = arith.constant 8 : index
    %c0_17 = arith.constant 0 : index
    %20 = vector.load %arg8[%c8, %c0_17] : memref<36x256xf32, #tpu.memory_space<vmem>>, vector<4x256xf32>
    tpu.vector_store %arg8[%c8, %c0_17], %19 {strides = array<i32>} : memref<36x256xf32, #tpu.memory_space<vmem>>, vector<4x256xf32>,
    %c1_i32 = arith.constant 1 : i32
    %21 = tpu.dynamic_rotate %5 by %c1_i32 dim 1 : vector<4x256xf32>, i32 -> vector<4x256xf32>
    %c3 = arith.constant 3 : index
    %c0_18 = arith.constant 0 : index
    %22 = vector.load %arg6[%c3, %c0_18] : memref<9x256xf32, #tpu.memory_space<vmem>>, vector<1x256xf32>
    %23 = vector.broadcast %22 : vector<1x256xf32> to vector<4x256xf32>
    %24 = arith.mulf %21, %23 : vector<4x256xf32>
    %c12 = arith.constant 12 : index
    %c0_19 = arith.constant 0 : index
    %25 = vector.load %arg8[%c12, %c0_19] : memref<36x256xf32, #tpu.memory_space<vmem>>, vector<4x256xf32>
    tpu.vector_store %arg8[%c12, %c0_19], %24 {strides = array<i32>} : memref<36x256xf32, #tpu.memory_space<vmem>>, vector<4x256xf32>,
    %c16 = arith.constant 16 : index
    %c0_20 = arith.constant 0 : index
    %26 = vector.load %arg8[%c16, %c0_20] : memref<36x256xf32, #tpu.memory_space<vmem>>, vector<4x256xf32>
    tpu.vector_store %arg8[%c16, %c0_20], %5 {strides = array<i32>} : memref<36x256xf32, #tpu.memory_space<vmem>>, vector<4x256xf32>,
    %c255_i32 = arith.constant 255 : i32
    %27 = tpu.dynamic_rotate %5 by %c255_i32 dim 1 : vector<4x256xf32>, i32 -> vector<4x256xf32>
    %c5 = arith.constant 5 : index
    %c0_21 = arith.constant 0 : index
    %28 = vector.load %arg6[%c5, %c0_21] : memref<9x256xf32, #tpu.memory_space<vmem>>, vector<1x256xf32>
    %29 = vector.broadcast %28 : vector<1x256xf32> to vector<4x256xf32>
    %30 = arith.mulf %27, %29 : vector<4x256xf32>
    %c20 = arith.constant 20 : index
    %c0_22 = arith.constant 0 : index
    %31 = vector.load %arg8[%c20, %c0_22] : memref<36x256xf32, #tpu.memory_space<vmem>>, vector<4x256xf32>
    tpu.vector_store %arg8[%c20, %c0_22], %30 {strides = array<i32>} : memref<36x256xf32, #tpu.memory_space<vmem>>, vector<4x256xf32>,
    %c241_i32 = arith.constant 241 : i32
    %32 = tpu.dynamic_rotate %5 by %c241_i32 dim 1 : vector<4x256xf32>, i32 -> vector<4x256xf32>
    %c6 = arith.constant 6 : index
    %c0_23 = arith.constant 0 : index
    %33 = vector.load %arg6[%c6, %c0_23] : memref<9x256xf32, #tpu.memory_space<vmem>>, vector<1x256xf32>
    %34 = vector.broadcast %33 : vector<1x256xf32> to vector<4x256xf32>
    %35 = arith.mulf %32, %34 : vector<4x256xf32>
    %c24 = arith.constant 24 : index
    %c0_24 = arith.constant 0 : index
    %36 = vector.load %arg8[%c24, %c0_24] : memref<36x256xf32, #tpu.memory_space<vmem>>, vector<4x256xf32>
    tpu.vector_store %arg8[%c24, %c0_24], %35 {strides = array<i32>} : memref<36x256xf32, #tpu.memory_space<vmem>>, vector<4x256xf32>,
    %c240_i32 = arith.constant 240 : i32
    %37 = tpu.dynamic_rotate %5 by %c240_i32 dim 1 : vector<4x256xf32>, i32 -> vector<4x256xf32>
    %c7 = arith.constant 7 : index
    %c0_25 = arith.constant 0 : index
    %38 = vector.load %arg6[%c7, %c0_25] : memref<9x256xf32, #tpu.memory_space<vmem>>, vector<1x256xf32>
    %39 = vector.broadcast %38 : vector<1x256xf32> to vector<4x256xf32>
    %40 = arith.mulf %37, %39 : vector<4x256xf32>
    %c28 = arith.constant 28 : index
    %c0_26 = arith.constant 0 : index
    %41 = vector.load %arg8[%c28, %c0_26] : memref<36x256xf32, #tpu.memory_space<vmem>>, vector<4x256xf32>
    tpu.vector_store %arg8[%c28, %c0_26], %40 {strides = array<i32>} : memref<36x256xf32, #tpu.memory_space<vmem>>, vector<4x256xf32>,
    %c239_i32 = arith.constant 239 : i32
    %42 = tpu.dynamic_rotate %5 by %c239_i32 dim 1 : vector<4x256xf32>, i32 -> vector<4x256xf32>
    %c8_27 = arith.constant 8 : index
    %c0_28 = arith.constant 0 : index
    %43 = vector.load %arg6[%c8_27, %c0_28] : memref<9x256xf32, #tpu.memory_space<vmem>>, vector<1x256xf32>
    %44 = vector.broadcast %43 : vector<1x256xf32> to vector<4x256xf32>
    %45 = arith.mulf %42, %44 : vector<4x256xf32>
    %c32 = arith.constant 32 : index
    %c0_29 = arith.constant 0 : index
    %46 = vector.load %arg8[%c32, %c0_29] : memref<36x256xf32, #tpu.memory_space<vmem>>, vector<4x256xf32>
    tpu.vector_store %arg8[%c32, %c0_29], %45 {strides = array<i32>} : memref<36x256xf32, #tpu.memory_space<vmem>>, vector<4x256xf32>,
    %c0_30 = arith.constant 0 : index
    %c0_31 = arith.constant 0 : index
    %47 = vector.load %arg8[%c0_30, %c0_31] : memref<36x256xf32, #tpu.memory_space<vmem>>, vector<36x256xf32>
    %cst = arith.constant dense<0.000000e+00> : vector<4x256xf32>
    %48 = tpu.matmul %0, %47, %cst {dimension_numbers = #tpu.dot_dimension_numbers<[1], [0], [0], [1], [0, 0, 1, 1], [], []>} : vector<4x36xf32>, vector<36x256xf32>, vector<4x256xf32> -> vector<4x256xf32>
    %49 = vector.broadcast %1 : vector<4x1xf32> to vector<4x256xf32>
    %50 = arith.addf %48, %49 : vector<4x256xf32>
    %cst_32 = arith.constant 0.000000e+00 : f32
    %51 = vector.broadcast %cst_32 : f32 to vector<4x256xf32>
    %52 = arith.maximumf %50, %51 : vector<4x256xf32>
    %c17_i32_33 = arith.constant 17 : i32
    %53 = tpu.dynamic_rotate %52 by %c17_i32_33 dim 1 : vector<4x256xf32>, i32 -> vector<4x256xf32>
    %c0_34 = arith.constant 0 : index
    %c0_35 = arith.constant 0 : index
    %54 = vector.load %arg6[%c0_34, %c0_35] : memref<9x256xf32, #tpu.memory_space<vmem>>, vector<1x256xf32>
    %55 = vector.broadcast %54 : vector<1x256xf32> to vector<4x256xf32>
    %56 = arith.mulf %53, %55 : vector<4x256xf32>
    %c0_36 = arith.constant 0 : index
    %c0_37 = arith.constant 0 : index
    %57 = vector.load %arg9[%c0_36, %c0_37] : memref<36x256xf32, #tpu.memory_space<vmem>>, vector<4x256xf32>
    tpu.vector_store %arg9[%c0_36, %c0_37], %56 {strides = array<i32>} : memref<36x256xf32, #tpu.memory_space<vmem>>, vector<4x256xf32>,
    %c16_i32_38 = arith.constant 16 : i32
    %58 = tpu.dynamic_rotate %52 by %c16_i32_38 dim 1 : vector<4x256xf32>, i32 -> vector<4x256xf32>
    %c1_39 = arith.constant 1 : index
    %c0_40 = arith.constant 0 : index
    %59 = vector.load %arg6[%c1_39, %c0_40] : memref<9x256xf32, #tpu.memory_space<vmem>>, vector<1x256xf32>
    %60 = vector.broadcast %59 : vector<1x256xf32> to vector<4x256xf32>
    %61 = arith.mulf %58, %60 : vector<4x256xf32>
    %c4_41 = arith.constant 4 : index
    %c0_42 = arith.constant 0 : index
    %62 = vector.load %arg9[%c4_41, %c0_42] : memref<36x256xf32, #tpu.memory_space<vmem>>, vector<4x256xf32>
    tpu.vector_store %arg9[%c4_41, %c0_42], %61 {strides = array<i32>} : memref<36x256xf32, #tpu.memory_space<vmem>>, vector<4x256xf32>,
    %c15_i32_43 = arith.constant 15 : i32
    %63 = tpu.dynamic_rotate %52 by %c15_i32_43 dim 1 : vector<4x256xf32>, i32 -> vector<4x256xf32>
    %c2_44 = arith.constant 2 : index
    %c0_45 = arith.constant 0 : index
    %64 = vector.load %arg6[%c2_44, %c0_45] : memref<9x256xf32, #tpu.memory_space<vmem>>, vector<1x256xf32>
    %65 = vector.broadcast %64 : vector<1x256xf32> to vector<4x256xf32>
    %66 = arith.mulf %63, %65 : vector<4x256xf32>
    %c8_46 = arith.constant 8 : index
    %c0_47 = arith.constant 0 : index
    %67 = vector.load %arg9[%c8_46, %c0_47] : memref<36x256xf32, #tpu.memory_space<vmem>>, vector<4x256xf32>
    tpu.vector_store %arg9[%c8_46, %c0_47], %66 {strides = array<i32>} : memref<36x256xf32, #tpu.memory_space<vmem>>, vector<4x256xf32>,
    %c1_i32_48 = arith.constant 1 : i32
    %68 = tpu.dynamic_rotate %52 by %c1_i32_48 dim 1 : vector<4x256xf32>, i32 -> vector<4x256xf32>
    %c3_49 = arith.constant 3 : index
    %c0_50 = arith.constant 0 : index
    %69 = vector.load %arg6[%c3_49, %c0_50] : memref<9x256xf32, #tpu.memory_space<vmem>>, vector<1x256xf32>
    %70 = vector.broadcast %69 : vector<1x256xf32> to vector<4x256xf32>
    %71 = arith.mulf %68, %70 : vector<4x256xf32>
    %c12_51 = arith.constant 12 : index
    %c0_52 = arith.constant 0 : index
    %72 = vector.load %arg9[%c12_51, %c0_52] : memref<36x256xf32, #tpu.memory_space<vmem>>, vector<4x256xf32>
    tpu.vector_store %arg9[%c12_51, %c0_52], %71 {strides = array<i32>} : memref<36x256xf32, #tpu.memory_space<vmem>>, vector<4x256xf32>,
    %c16_53 = arith.constant 16 : index
    %c0_54 = arith.constant 0 : index
    %73 = vector.load %arg9[%c16_53, %c0_54] : memref<36x256xf32, #tpu.memory_space<vmem>>, vector<4x256xf32>
    tpu.vector_store %arg9[%c16_53, %c0_54], %52 {strides = array<i32>} : memref<36x256xf32, #tpu.memory_space<vmem>>, vector<4x256xf32>,
    %c255_i32_55 = arith.constant 255 : i32
    %74 = tpu.dynamic_rotate %52 by %c255_i32_55 dim 1 : vector<4x256xf32>, i32 -> vector<4x256xf32>
    %c5_56 = arith.constant 5 : index
    %c0_57 = arith.constant 0 : index
    %75 = vector.load %arg6[%c5_56, %c0_57] : memref<9x256xf32, #tpu.memory_space<vmem>>, vector<1x256xf32>
    %76 = vector.broadcast %75 : vector<1x256xf32> to vector<4x256xf32>
    %77 = arith.mulf %74, %76 : vector<4x256xf32>
    %c20_58 = arith.constant 20 : index
    %c0_59 = arith.constant 0 : index
    %78 = vector.load %arg9[%c20_58, %c0_59] : memref<36x256xf32, #tpu.memory_space<vmem>>, vector<4x256xf32>
    tpu.vector_store %arg9[%c20_58, %c0_59], %77 {strides = array<i32>} : memref<36x256xf32, #tpu.memory_space<vmem>>, vector<4x256xf32>,
    %c241_i32_60 = arith.constant 241 : i32
    %79 = tpu.dynamic_rotate %52 by %c241_i32_60 dim 1 : vector<4x256xf32>, i32 -> vector<4x256xf32>
    %c6_61 = arith.constant 6 : index
    %c0_62 = arith.constant 0 : index
    %80 = vector.load %arg6[%c6_61, %c0_62] : memref<9x256xf32, #tpu.memory_space<vmem>>, vector<1x256xf32>
    %81 = vector.broadcast %80 : vector<1x256xf32> to vector<4x256xf32>
    %82 = arith.mulf %79, %81 : vector<4x256xf32>
    %c24_63 = arith.constant 24 : index
    %c0_64 = arith.constant 0 : index
    %83 = vector.load %arg9[%c24_63, %c0_64] : memref<36x256xf32, #tpu.memory_space<vmem>>, vector<4x256xf32>
    tpu.vector_store %arg9[%c24_63, %c0_64], %82 {strides = array<i32>} : memref<36x256xf32, #tpu.memory_space<vmem>>, vector<4x256xf32>,
    %c240_i32_65 = arith.constant 240 : i32
    %84 = tpu.dynamic_rotate %52 by %c240_i32_65 dim 1 : vector<4x256xf32>, i32 -> vector<4x256xf32>
    %c7_66 = arith.constant 7 : index
    %c0_67 = arith.constant 0 : index
    %85 = vector.load %arg6[%c7_66, %c0_67] : memref<9x256xf32, #tpu.memory_space<vmem>>, vector<1x256xf32>
    %86 = vector.broadcast %85 : vector<1x256xf32> to vector<4x256xf32>
    %87 = arith.mulf %84, %86 : vector<4x256xf32>
    %c28_68 = arith.constant 28 : index
    %c0_69 = arith.constant 0 : index
    %88 = vector.load %arg9[%c28_68, %c0_69] : memref<36x256xf32, #tpu.memory_space<vmem>>, vector<4x256xf32>
    tpu.vector_store %arg9[%c28_68, %c0_69], %87 {strides = array<i32>} : memref<36x256xf32, #tpu.memory_space<vmem>>, vector<4x256xf32>,
    %c239_i32_70 = arith.constant 239 : i32
    %89 = tpu.dynamic_rotate %52 by %c239_i32_70 dim 1 : vector<4x256xf32>, i32 -> vector<4x256xf32>
    %c8_71 = arith.constant 8 : index
    %c0_72 = arith.constant 0 : index
    %90 = vector.load %arg6[%c8_71, %c0_72] : memref<9x256xf32, #tpu.memory_space<vmem>>, vector<1x256xf32>
    %91 = vector.broadcast %90 : vector<1x256xf32> to vector<4x256xf32>
    %92 = arith.mulf %89, %91 : vector<4x256xf32>
    %c32_73 = arith.constant 32 : index
    %c0_74 = arith.constant 0 : index
    %93 = vector.load %arg9[%c32_73, %c0_74] : memref<36x256xf32, #tpu.memory_space<vmem>>, vector<4x256xf32>
    tpu.vector_store %arg9[%c32_73, %c0_74], %92 {strides = array<i32>} : memref<36x256xf32, #tpu.memory_space<vmem>>, vector<4x256xf32>,
    %c0_75 = arith.constant 0 : index
    %c0_76 = arith.constant 0 : index
    %94 = vector.load %arg9[%c0_75, %c0_76] : memref<36x256xf32, #tpu.memory_space<vmem>>, vector<36x256xf32>
    %cst_77 = arith.constant dense<0.000000e+00> : vector<4x256xf32>
    %95 = tpu.matmul %2, %94, %cst_77 {dimension_numbers = #tpu.dot_dimension_numbers<[1], [0], [0], [1], [0, 0, 1, 1], [], []>} : vector<4x36xf32>, vector<36x256xf32>, vector<4x256xf32> -> vector<4x256xf32>
    %96 = vector.broadcast %3 : vector<4x1xf32> to vector<4x256xf32>
    %97 = arith.addf %95, %96 : vector<4x256xf32>
    %cst_78 = arith.constant 0.000000e+00 : f32
    %98 = vector.broadcast %cst_78 : f32 to vector<4x256xf32>
    %99 = arith.maximumf %97, %98 : vector<4x256xf32>
    %c0_79 = arith.constant 0 : index
    %c0_80 = arith.constant 0 : index
    %c0_81 = arith.constant 0 : index
    %100 = vector.load %arg7[%c0_79, %c0_80, %c0_81] : memref<1x4x256xf32, #tpu.memory_space<vmem>>, vector<1x4x256xf32>
    %101 = vector.shape_cast %100 : vector<1x4x256xf32> to vector<4x256xf32>
    %102 = vector.shape_cast %99 : vector<4x256xf32> to vector<1x4x256xf32>
    tpu.vector_store %arg7[%c0_79, %c0_80, %c0_81], %102 {strides = array<i32>} : memref<1x4x256xf32, #tpu.memory_space<vmem>>, vector<1x4x256xf32>,
    return
  }
  func.func @transform_0(%arg0: i32) -> (i32, i32, i32) {
    %c0_i32 = arith.constant 0 : i32
    %c0_i32_0 = arith.constant 0 : i32
    %c0_i32_1 = arith.constant 0 : i32
    return %arg0, %c0_i32, %c0_i32_0 : i32, i32, i32
  }
  func.func @transform_1(%arg0: i32) -> (i32, i32) {
    %c0_i32 = arith.constant 0 : i32
    %c0_i32_0 = arith.constant 0 : i32
    %c0_i32_1 = arith.constant 0 : i32
    return %c0_i32, %c0_i32_0 : i32, i32
  }
  func.func @transform_2(%arg0: i32) -> (i32, i32) {
    %c0_i32 = arith.constant 0 : i32
    %c0_i32_0 = arith.constant 0 : i32
    %c0_i32_1 = arith.constant 0 : i32
    return %c0_i32, %c0_i32_0 : i32, i32
  }
  func.func @transform_3(%arg0: i32) -> (i32, i32) {
    %c0_i32 = arith.constant 0 : i32
    %c0_i32_0 = arith.constant 0 : i32
    %c0_i32_1 = arith.constant 0 : i32
    return %c0_i32, %c0_i32_0 : i32, i32
  }
  func.func @transform_4(%arg0: i32) -> (i32, i32) {
    %c0_i32 = arith.constant 0 : i32
    %c0_i32_0 = arith.constant 0 : i32
    %c0_i32_1 = arith.constant 0 : i32
    return %c0_i32, %c0_i32_0 : i32, i32
  }
  func.func @transform_5(%arg0: i32) -> (i32, i32) {
    %c0_i32 = arith.constant 0 : i32
    %c0_i32_0 = arith.constant 0 : i32
    %c0_i32_1 = arith.constant 0 : i32
    return %c0_i32, %c0_i32_0 : i32, i32
  }
  func.func @transform_6(%arg0: i32) -> (i32, i32, i32) {
    %c0_i32 = arith.constant 0 : i32
    %c0_i32_0 = arith.constant 0 : i32
    %c0_i32_1 = arith.constant 0 : i32
    return %arg0, %c0_i32, %c0_i32_0 : i32, i32, i32
  }
}

</mosaic_0001>

<llo_original>
// kernel: conv_relu_block_2d.1
$region0: #{conv_relu_block_2d.1}
  #allocation0 [shape = 'u32[]', space=smem, size = 0x4, offset = 0x4, fixed_abs, tag = 'smem constant byte address 0x4 - core index']
  #allocation1 [shape = 'u32[144,128]{1,0:T(1,128)}', space=vmem, size = 0x12000, scoped, tag = 'internal scratch']
  #allocation2 [shape = 'f32[36,256]{1,0:T(8,128)}', space=vmem, size = 0xa000, scoped, tag = 'scratch operand']
  #allocation3 [shape = 'f32[36,256]{1,0:T(8,128)}', space=vmem, size = 0xa000, scoped, tag = 'scratch operand']
  %s0 = inlined_call_operand.vmem [shape: f32[2,4,256], index: 0, kind: input, shape index: {}]
  %s1 = inlined_call_operand.vmem [shape: f32[4,36], index: 1, kind: input, shape index: {}]
  %s2 = inlined_call_operand.vmem [shape: f32[4,1], index: 2, kind: input, shape index: {}]
  %s3 = inlined_call_operand.vmem [shape: f32[4,36], index: 3, kind: input, shape index: {}]
  %s4 = inlined_call_operand.vmem [shape: f32[4,1], index: 4, kind: input, shape index: {}]
  %s5 = inlined_call_operand.vmem [shape: f32[9,256], index: 5, kind: input, shape index: {}]
  %s6 = inlined_call_operand.vmem [shape: f32[2,4,256], index: 6, kind: output, shape index: {}]
  %s7 = sld [smem:[#allocation0]]
  $region57: #{conv_relu_block_2d.1} parent=0
    _
  %s9 = ssub.s32 1, %s7
  %s10 = scalar_select 0, %s9, %s7
  loop: start=0, step=1, limit=4
  $region2: #{conv_relu_block_2d.1} parent=0 // loop_pre_header
    _
  $region3: #{conv_relu_block_2d.1} parent=0 // loop_header
    %s12 = sphi 0, %s16
    %p13 = scmp.ge.s32.totalorder %s12, 4
    %s22 = sphi 0, %s24
    %s25 = sphi 0, %s22
    %s26 = sphi 0, %s25
    %s42 = sphi 0, %s26
    %s46 = sphi 0, %s46
    %s48 = sphi 0, %s46
    %s49 = sphi 0, %s48
    %s63 = sphi 0, %s49
    %s67 = sphi 0, %s67
    %s69 = sphi 0, %s67
    %s70 = sphi 0, %s69
    %s84 = sphi 0, %s70
    %s88 = sphi 0, %s88
    %s90 = sphi 0, %s88
    %s91 = sphi 0, %s90
    %s105 = sphi 0, %s91
    %s109 = sphi 0, %s109
    %s111 = sphi 0, %s109
    %s112 = sphi 0, %s111
    %s126 = sphi 0, %s112
    %s130 = sphi 0, %s130
    %s132 = sphi 0, %s130
    %s133 = sphi 0, %s132
    %s147 = sphi 0, %s133
    %s153 = sphi 0, %s155
    %s156 = sphi 0, %s153
    %s157 = sphi 0, %s156
    %s173 = sphi 0, %s157
  $region4: #{conv_relu_block_2d.1} parent=0 // loop_header_branch
    %15 = sbr.rel (%p13) target = $region8
  $region5: #{conv_relu_block_2d.1} parent=0 // loop_body
    %s17 = ssub.s32 %s12, 1
    %s18 = ssub.s32 %s12, 2
    %s19 = sadd.s32 %s12, 1
    %s20 = ssub.s32 %s12, %s19
    %p21 = scmp.eq.s32.totalorder %s20, 0
    %s23 = sadd.s32 %s22, 1
    %s24 = scalar_select %p21, %s22, %s23
    %p27 = pneg %p21
    %p28 = scmp.eq.s32.totalorder %s12, 1
    %p29 = por %p27, %p28
    %p30 = scmp.ne.s32.totalorder %s22, %s25
    %p31 = scmp.eq.s32.totalorder %s12, 0
    %p32 = por %p30, %p31
    %p33 = scmp.ne.s32.totalorder %s22, %s25
    %p34 = scmp.eq.s32.totalorder %s17, 1
    %p35 = por %p33, %p34
    %p36 = scmp.ne.s32.totalorder %s25, %s26
    %p37 = scmp.eq.s32.totalorder %s17, 0
    %p38 = por %p36, %p37
    %p39 = scmp.ne.s32.totalorder %s25, %s26
    %p40 = scmp.eq.s32.totalorder %s18, 1
    %p41 = por %p39, %p40
    %p43 = scmp.ne.s32.totalorder %s26, %s42
    %p44 = scmp.eq.s32.totalorder %s18, 0
    %p45 = por %p43, %p44
    %s47 = sadd.s32 %s46, 1
    %p50 = scmp.eq.s32.totalorder %s12, 1
    %p51 = scmp.ne.s32.totalorder %s46, %s48
    %p52 = scmp.eq.s32.totalorder %s12, 0
    %p53 = por %p51, %p52
    %p54 = scmp.ne.s32.totalorder %s46, %s48
    %p55 = scmp.eq.s32.totalorder %s17, 1
    %p56 = por %p54, %p55
    %p57 = scmp.ne.s32.totalorder %s48, %s49
    %p58 = scmp.eq.s32.totalorder %s17, 0
    %p59 = por %p57, %p58
    %p60 = scmp.ne.s32.totalorder %s48, %s49
    %p61 = scmp.eq.s32.totalorder %s18, 1
    %p62 = por %p60, %p61
    %p64 = scmp.ne.s32.totalorder %s49, %s63
    %p65 = scmp.eq.s32.totalorder %s18, 0
    %p66 = por %p64, %p65
    %s68 = sadd.s32 %s67, 1
    %p71 = scmp.eq.s32.totalorder %s12, 1
    %p72 = scmp.ne.s32.totalorder %s67, %s69
    %p73 = scmp.eq.s32.totalorder %s12, 0
    %p74 = por %p72, %p73
    %p75 = scmp.ne.s32.totalorder %s67, %s69
    %p76 = scmp.eq.s32.totalorder %s17, 1
    %p77 = por %p75, %p76
    %p78 = scmp.ne.s32.totalorder %s69, %s70
    %p79 = scmp.eq.s32.totalorder %s17, 0
    %p80 = por %p78, %p79
    %p81 = scmp.ne.s32.totalorder %s69, %s70
    %p82 = scmp.eq.s32.totalorder %s18, 1
    %p83 = por %p81, %p82
    %p85 = scmp.ne.s32.totalorder %s70, %s84
    %p86 = scmp.eq.s32.totalorder %s18, 0
    %p87 = por %p85, %p86
    %s89 = sadd.s32 %s88, 1
    %p92 = scmp.eq.s32.totalorder %s12, 1
    %p93 = scmp.ne.s32.totalorder %s88, %s90
    %p94 = scmp.eq.s32.totalorder %s12, 0
    %p95 = por %p93, %p94
    %p96 = scmp.ne.s32.totalorder %s88, %s90
    %p97 = scmp.eq.s32.totalorder %s17, 1
    %p98 = por %p96, %p97
    %p99 = scmp.ne.s32.totalorder %s90, %s91
    %p100 = scmp.eq.s32.totalorder %s17, 0
    %p101 = por %p99, %p100
    %p102 = scmp.ne.s32.totalorder %s90, %s91
    %p103 = scmp.eq.s32.totalorder %s18, 1
    %p104 = por %p102, %p103
    %p106 = scmp.ne.s32.totalorder %s91, %s105
    %p107 = scmp.eq.s32.totalorder %s18, 0
    %p108 = por %p106, %p107
    %s110 = sadd.s32 %s109, 1
    %p113 = scmp.eq.s32.totalorder %s12, 1
    %p114 = scmp.ne.s32.totalorder %s109, %s111
    %p115 = scmp.eq.s32.totalorder %s12, 0
    %p116 = por %p114, %p115
    %p117 = scmp.ne.s32.totalorder %s109, %s111
    %p118 = scmp.eq.s32.totalorder %s17, 1
    %p119 = por %p117, %p118
    %p120 = scmp.ne.s32.totalorder %s111, %s112
    %p121 = scmp.eq.s32.totalorder %s17, 0
    %p122 = por %p120, %p121
    %p123 = scmp.ne.s32.totalorder %s111, %s112
    %p124 = scmp.eq.s32.totalorder %s18, 1
    %p125 = por %p123, %p124
    %p127 = scmp.ne.s32.totalorder %s112, %s126
    %p128 = scmp.eq.s32.totalorder %s18, 0
    %p129 = por %p127, %p128
    %s131 = sadd.s32 %s130, 1
    %p134 = scmp.eq.s32.totalorder %s12, 1
    %p135 = scmp.ne.s32.totalorder %s130, %s132
    %p136 = scmp.eq.s32.totalorder %s12, 0
    %p137 = por %p135, %p136
    %p138 = scmp.ne.s32.totalorder %s130, %s132
    %p139 = scmp.eq.s32.totalorder %s17, 1
    %p140 = por %p138, %p139
    %p141 = scmp.ne.s32.totalorder %s132, %s133
    %p142 = scmp.eq.s32.totalorder %s17, 0
    %p143 = por %p141, %p142
    %p144 = scmp.ne.s32.totalorder %s132, %s133
    %p145 = scmp.eq.s32.totalorder %s18, 1
    %p146 = por %p144, %p145
    %p148 = scmp.ne.s32.totalorder %s133, %s147
    %p149 = scmp.eq.s32.totalorder %s18, 0
    %p150 = por %p148, %p149
    %s151 = ssub.s32 %s12, %s19
    %p152 = scmp.eq.s32.totalorder %s151, 0
    %s154 = sadd.s32 %s153, 1
    %s155 = scalar_select %p152, %s153, %s154
    %p158 = pneg %p152
    %p159 = scmp.eq.s32.totalorder %s12, 1
    %p160 = por %p158, %p159
    %p161 = scmp.ne.s32.totalorder %s153, %s156
    %p162 = scmp.eq.s32.totalorder %s12, 0
    %p163 = por %p161, %p162
    %p164 = scmp.ne.s32.totalorder %s153, %s156
    %p165 = scmp.eq.s32.totalorder %s17, 1
    %p166 = por %p164, %p165
    %p167 = scmp.ne.s32.totalorder %s156, %s157
    %p168 = scmp.eq.s32.totalorder %s17, 0
    %p169 = por %p167, %p168
    %p170 = scmp.ne.s32.totalorder %s156, %s157
    %p171 = scmp.eq.s32.totalorder %s18, 1
    %p172 = por %p170, %p171
    %p174 = scmp.ne.s32.totalorder %s157, %s173
    %p175 = scmp.eq.s32.totalorder %s18, 0
    %p176 = por %p174, %p175
    %p177 = scmp.le.s32.totalorder 1, %s12
    %p178 = scmp.lt.s32.totalorder %s12, 3
    %p179 = pnand %p177, %p178
    %p180 = pneg %p179
    // Predicated region
    $region9: #{conv_relu_block_2d.1} parent=5 // pred_check
      _
    $region10: #{conv_relu_block_2d.1} parent=5 // pred_check_branch
      %182 = sbr.rel (%p179) target = $region12
    $region11: #{conv_relu_block_2d.1} parent=5 // pred_region
      %s183 = ssub.s32 %s12, 1
      // Predicated region
      $region13: #{conv_relu_block_2d.1} parent=11 // pred_check
        %p184 = pneg %p59
      $region14: #{conv_relu_block_2d.1} parent=11 // pred_check_branch
        %186 = sbr.rel (%p184) target = $region16
      $region15: #{conv_relu_block_2d.1} parent=11 // pred_region
        _
      $region16: #{conv_relu_block_2d.1} parent=11 // pred_fallthru
        _
      // Predicated region
      $region17: #{conv_relu_block_2d.1} parent=11 // pred_check
        %p187 = pneg %p80
      $region18: #{conv_relu_block_2d.1} parent=11 // pred_check_branch
        %189 = sbr.rel (%p187) target = $region20
      $region19: #{conv_relu_block_2d.1} parent=11 // pred_region
        _
      $region20: #{conv_relu_block_2d.1} parent=11 // pred_fallthru
        _
      // Predicated region
      $region21: #{conv_relu_block_2d.1} parent=11 // pred_check
        %p190 = pneg %p101
      $region22: #{conv_relu_block_2d.1} parent=11 // pred_check_branch
        %192 = sbr.rel (%p190) target = $region24
      $region23: #{conv_relu_block_2d.1} parent=11 // pred_region
        _
      $region24: #{conv_relu_block_2d.1} parent=11 // pred_fallthru
        _
      // Predicated region
      $region25: #{conv_relu_block_2d.1} parent=11 // pred_check
        %p193 = pneg %p122
      $region26: #{conv_relu_block_2d.1} parent=11 // pred_check_branch
        %195 = sbr.rel (%p193) target = $region28
      $region27: #{conv_relu_block_2d.1} parent=11 // pred_region
        _
      $region28: #{conv_relu_block_2d.1} parent=11 // pred_fallthru
        _
      // Predicated region
      $region29: #{conv_relu_block_2d.1} parent=11 // pred_check
        %p196 = pneg %p143
      $region30: #{conv_relu_block_2d.1} parent=11 // pred_check_branch
        %198 = sbr.rel (%p196) target = $region32
      $region31: #{conv_relu_block_2d.1} parent=11 // pred_region
        _
      $region32: #{conv_relu_block_2d.1} parent=11 // pred_fallthru
        _
    $region12: #{conv_relu_block_2d.1} parent=5 // pred_fallthru
      _
    %p199 = scmp.lt.s32.totalorder %s12, 2
    // Predicated region
    $region33: #{conv_relu_block_2d.1} parent=5 // pred_check
      %p200 = pneg %p199
    $region34: #{conv_relu_block_2d.1} parent=5 // pred_check_branch
      %202 = sbr.rel (%p200) target = $region36
    $region35: #{conv_relu_block_2d.1} parent=5 // pred_region
      // Predicated region
      $region37: #{conv_relu_block_2d.1} parent=35 // pred_check
        %p203 = pneg %p32
      $region38: #{conv_relu_block_2d.1} parent=35 // pred_check_branch
        %205 = sbr.rel (%p203) target = $region40
      $region39: #{conv_relu_block_2d.1} parent=35 // pred_region
        %p206 = scmp.lt.s32.totalorder %s12, 1
        %s207 = scalar_select %p206, %s12, 1
        %s208 = smul.addr %s207, 2
        %s209 = smul.addr %s208, 4
        %s210 = scalar_lea.vmem %s0, %s209
      $region40: #{conv_relu_block_2d.1} parent=35 // pred_fallthru
        _
    $region36: #{conv_relu_block_2d.1} parent=5 // pred_fallthru
      _
    %p211 = scmp.le.s32.totalorder 1, %s12
    %p212 = scmp.lt.s32.totalorder %s12, 3
    %p213 = pnand %p211, %p212
    %p214 = pneg %p213
    // Predicated region
    $region41: #{conv_relu_block_2d.1} parent=5 // pred_check
      _
    $region42: #{conv_relu_block_2d.1} parent=5 // pred_check_branch
      %216 = sbr.rel (%p213) target = $region44
    $region43: #{conv_relu_block_2d.1} parent=5 // pred_region
      %s217 = ssub.s32 %s12, 1
      %p218 = scmp.lt.s32.totalorder %s17, 1
      %s219 = scalar_select %p218, %s17, 1
      %s220 = smul.addr %s219, 2
      %s221 = smul.addr %s220, 4
      %s222 = scalar_lea.vmem %s0, %s221
      %p223 = pneg %p38
      %p224 = pneg %p35
      %p225 = pneg %p59
      %p226 = pneg %p56
      %p227 = pneg %p80
      %p228 = pneg %p77
      %p229 = pneg %p101
      %p230 = pneg %p98
      %p231 = pneg %p122
      %p232 = pneg %p119
      %p233 = pneg %p143
      %p234 = pneg %p140
      %p235 = pneg %p169
      %p236 = pneg %p166
      %p237 = scmp.lt.s32.totalorder %s17, 1
      %s238 = scalar_select %p237, %s17, 1
      %s239 = smul.addr %s238, 2
      %s240 = smul.addr %s239, 4
      %s241 = scalar_lea.vmem %s6, %s240
      %p242 = scmp.lt.s32.totalorder %s17, 1
      %s243 = scalar_select %p242, %s17, 1
      %s244 = smul.addr %s243, 2
      %s245 = smul.addr %s244, 4
      %s246 = scalar_lea.vmem %s0, %s245
      %p247 = scmp.lt.s32.totalorder %s17, 1
      %s248 = scalar_select %p247, %s17, 1
      %s249 = smul.addr %s248, 2
      %s250 = smul.addr %s249, 4
      %s251 = scalar_lea.vmem %s6, %s250
      %v252 = vld [vmem:[%s1] sm:$0xf]
      %v253 = vld [vmem:[%s2] sm:$0xf]
      %v254 = vld [vmem:[%s3] sm:$0xf]
      %v255 = vld [vmem:[%s4] sm:$0xf]
      %v256 = vld [vmem:[%s246] sm:$0xff]
      %v258 = vcombine.high %v256, %v256
      %260 = vrot.lane.b32.xlu0 %v256, 17
      %v261 = vpop.permute.xlu0 %260
      %262 = vrot.lane.b32.xlu0 %v258, 17
      %v263 = vpop.permute.xlu0 %262
      %v264 = vlaneseq
      %v265 = vand.u32 %v264, 127
      %vm266 = vcmp.lt.s32.totalorder %v265, 17
      %v267 = vsel %vm266, %v261, %v263
      %v268 = vsel %vm266, %v263, %v261
      %v269 = vld [vmem:[%s5] ss:$8 sm:$0x3]
      %v271 = vlaneseq
      %v272 = vshrl.u32 %v271, 7
      %v273 = vsub.s32 0, %v272
      %v274 = vrot.slane %v269, %v273
      %v275 = vlaneseq
      %v276 = vshrl.u32 %v275, 7
      %v277 = vsub.s32 1, %v276
      %v278 = vrot.slane %v269, %v277
      %v281 = vmul.f32 %v268, %v274
      %v282 = vmul.f32 %v267, %v278
      %283 = vst [vmem:[#allocation2] sm:$0xf] %v281
      %284 = vst [vmem:[#allocation2 + $0x8] sm:$0xf] %v282
      %285 = vrot.lane.b32.xlu0 %v256, 16
      %v286 = vpop.permute.xlu0 %285
      %287 = vrot.lane.b32.xlu0 %v258, 16
      %v288 = vpop.permute.xlu0 %287
      %vm289 = vcmp.lt.s32.totalorder %v265, 16
      %v290 = vsel %vm289, %v286, %v288
      %v291 = vsel %vm289, %v288, %v286
      %s292 = scalar_lea.vmem %s5, 1
      %v293 = vld [vmem:[%s292] ss:$8 sm:$0x3]
      %v295 = vlaneseq
      %v296 = vshrl.u32 %v295, 7
      %v297 = vsub.s32 0, %v296
      %v298 = vrot.slane %v293, %v297
      %v299 = vlaneseq
      %v300 = vshrl.u32 %v299, 7
      %v301 = vsub.s32 1, %v300
      %v302 = vrot.slane %v293, %v301
      %v305 = vmul.f32 %v291, %v298
      %v306 = vmul.f32 %v290, %v302
      %v309 = vrot.slane %v305, 4
      %v310 = vrot.slane %v306, 4
      %313 = vst [vmem:[#allocation2] sm:$0xf0] %v309
      %314 = vst [vmem:[#allocation2 + $0x8] sm:$0xf0] %v310
      %315 = vrot.lane.b32.xlu0 %v256, 15
      %v316 = vpop.permute.xlu0 %315
      %317 = vrot.lane.b32.xlu0 %v258, 15
      %v318 = vpop.permute.xlu0 %317
      %vm319 = vcmp.lt.s32.totalorder %v265, 15
      %v320 = vsel %vm319, %v316, %v318
      %v321 = vsel %vm319, %v318, %v316
      %s322 = scalar_lea.vmem %s5, 2
      %v323 = vld [vmem:[%s322] ss:$8 sm:$0x3]
      %v325 = vlaneseq
      %v326 = vshrl.u32 %v325, 7
      %v327 = vsub.s32 0, %v326
      %v328 = vrot.slane %v323, %v327
      %v329 = vlaneseq
      %v330 = vshrl.u32 %v329, 7
      %v331 = vsub.s32 1, %v330
      %v332 = vrot.slane %v323, %v331
      %v335 = vmul.f32 %v321, %v328
      %v336 = vmul.f32 %v320, %v332
      %337 = vst [vmem:[#allocation2 + $0x10] sm:$0xf] %v335
      %338 = vst [vmem:[#allocation2 + $0x18] sm:$0xf] %v336
      %339 = vrot.lane.b32.xlu0 %v256, 1
      %v340 = vpop.permute.xlu0 %339
      %341 = vrot.lane.b32.xlu0 %v258, 1
      %v342 = vpop.permute.xlu0 %341
      %vm343 = vcmp.lt.s32.totalorder %v265, 1
      %v344 = vsel %vm343, %v340, %v342
      %v345 = vsel %vm343, %v342, %v340
      %s346 = scalar_lea.vmem %s5, 3
      %v347 = vld [vmem:[%s346] ss:$8 sm:$0x3]
      %v349 = vlaneseq
      %v350 = vshrl.u32 %v349, 7
      %v351 = vsub.s32 0, %v350
      %v352 = vrot.slane %v347, %v351
      %v353 = vlaneseq
      %v354 = vshrl.u32 %v353, 7
      %v355 = vsub.s32 1, %v354
      %v356 = vrot.slane %v347, %v355
      %v359 = vmul.f32 %v345, %v352
      %v360 = vmul.f32 %v344, %v356
      %v363 = vrot.slane %v359, 4
      %v364 = vrot.slane %v360, 4
      %367 = vst [vmem:[#allocation2 + $0x10] sm:$0xf0] %v363
      %368 = vst [vmem:[#allocation2 + $0x18] sm:$0xf0] %v364
      %369 = vst [vmem:[#allocation2 + $0x20] sm:$0xf] %v256
      %370 = vst [vmem:[#allocation2 + $0x28] sm:$0xf] %v258
      %371 = vrot.lane.b32.xlu0 %v256, 127
      %v372 = vpop.permute.xlu0 %371
      %373 = vrot.lane.b32.xlu0 %v258, 127
      %v374 = vpop.permute.xlu0 %373
      %vm375 = vcmp.lt.s32.totalorder %v265, 127
      %v376 = vsel %vm375, %v372, %v374
      %v377 = vsel %vm375, %v374, %v372
      %s378 = scalar_lea.vmem %s5, 5
      %v379 = vld [vmem:[%s378] ss:$8 sm:$0x3]
      %v381 = vlaneseq
      %v382 = vshrl.u32 %v381, 7
      %v383 = vsub.s32 0, %v382
      %v384 = vrot.slane %v379, %v383
      %v385 = vlaneseq
      %v386 = vshrl.u32 %v385, 7
      %v387 = vsub.s32 1, %v386
      %v388 = vrot.slane %v379, %v387
      %v391 = vmul.f32 %v376, %v384
      %v392 = vmul.f32 %v377, %v388
      %v395 = vrot.slane %v391, 4
      %v396 = vrot.slane %v392, 4
      %399 = vst [vmem:[#allocation2 + $0x20] sm:$0xf0] %v395
      %400 = vst [vmem:[#allocation2 + $0x28] sm:$0xf0] %v396
      %401 = vrot.lane.b32.xlu0 %v256, 113
      %v402 = vpop.permute.xlu0 %401
      %403 = vrot.lane.b32.xlu0 %v258, 113
      %v404 = vpop.permute.xlu0 %403
      %vm405 = vcmp.lt.s32.totalorder %v265, 113
      %v406 = vsel %vm405, %v402, %v404
      %v407 = vsel %vm405, %v404, %v402
      %s408 = scalar_lea.vmem %s5, 6
      %v409 = vld [vmem:[%s408] ss:$8 sm:$0x3]
      %v411 = vlaneseq
      %v412 = vshrl.u32 %v411, 7
      %v413 = vsub.s32 0, %v412
      %v414 = vrot.slane %v409, %v413
      %v415 = vlaneseq
      %v416 = vshrl.u32 %v415, 7
      %v417 = vsub.s32 1, %v416
      %v418 = vrot.slane %v409, %v417
      %v421 = vmul.f32 %v406, %v414
      %v422 = vmul.f32 %v407, %v418
      %423 = vst [vmem:[#allocation2 + $0x30] sm:$0xf] %v421
      %424 = vst [vmem:[#allocation2 + $0x38] sm:$0xf] %v422
      %425 = vrot.lane.b32.xlu0 %v256, 112
      %v426 = vpop.permute.xlu0 %425
      %427 = vrot.lane.b32.xlu0 %v258, 112
      %v428 = vpop.permute.xlu0 %427
      %vm429 = vcmp.lt.s32.totalorder %v265, 112
      %v430 = vsel %vm429, %v426, %v428
      %v431 = vsel %vm429, %v428, %v426
      %s432 = scalar_lea.vmem %s5, 7
      %v433 = vld [vmem:[%s432] ss:$8 sm:$0x3]
      %v435 = vlaneseq
      %v436 = vshrl.u32 %v435, 7
      %v437 = vsub.s32 0, %v436
      %v438 = vrot.slane %v433, %v437
      %v439 = vlaneseq
      %v440 = vshrl.u32 %v439, 7
      %v441 = vsub.s32 1, %v440
      %v442 = vrot.slane %v433, %v441
      %v445 = vmul.f32 %v430, %v438
      %v446 = vmul.f32 %v431, %v442
      %v449 = vrot.slane %v445, 4
      %v450 = vrot.slane %v446, 4
      %453 = vst [vmem:[#allocation2 + $0x30] sm:$0xf0] %v449
      %454 = vst [vmem:[#allocation2 + $0x38] sm:$0xf0] %v450
      %455 = vrot.lane.b32.xlu0 %v256, 111
      %v456 = vpop.permute.xlu0 %455
      %457 = vrot.lane.b32.xlu0 %v258, 111
      %v458 = vpop.permute.xlu0 %457
      %vm459 = vcmp.lt.s32.totalorder %v265, 111
      %v460 = vsel %vm459, %v456, %v458
      %v461 = vsel %vm459, %v458, %v456
      %s462 = scalar_lea.vmem %s5, 16
      %v463 = vld [vmem:[%s462] ss:$8 sm:$0x3]
      %v465 = vlaneseq
      %v466 = vshrl.u32 %v465, 7
      %v467 = vsub.s32 0, %v466
      %v468 = vrot.slane %v463, %v467
      %v469 = vlaneseq
      %v470 = vshrl.u32 %v469, 7
      %v471 = vsub.s32 1, %v470
      %v472 = vrot.slane %v463, %v471
      %v475 = vmul.f32 %v460, %v468
      %v476 = vmul.f32 %v461, %v472
      %477 = vst [vmem:[#allocation2 + $0x40] sm:$0xf] %v475
      %478 = vst [vmem:[#allocation2 + $0x48] sm:$0xf] %v476
      %v479 = vld [vmem:[#allocation2] sm:$0xff]
      %v480 = vld [vmem:[#allocation2 + $0x8] sm:$0xff]
      %v481 = vld [vmem:[#allocation2 + $0x10] sm:$0xff]
      %v482 = vld [vmem:[#allocation2 + $0x18] sm:$0xff]
      %v483 = vld [vmem:[#allocation2 + $0x20] sm:$0xff]
      %v484 = vld [vmem:[#allocation2 + $0x28] sm:$0xff]
      %v485 = vld [vmem:[#allocation2 + $0x30] sm:$0xff]
      %v486 = vld [vmem:[#allocation2 + $0x38] sm:$0xff]
      %v487 = vld [vmem:[#allocation2 + $0x40] sm:$0xf]
      %v488 = vld [vmem:[#allocation2 + $0x48] sm:$0xf]
      %490 = vset.pattern.permute.xlu0 0
      %491 = vperm.xlu0 %490, %v253
      %v492 = vpop.permute.xlu0 %491
      %vm494 = vcmask 293888
      %v496 = vsel %vm494, %v252, 0
      %vm498 = vcmask 1043456
      %v500 = vsel %vm498, %v487, 0
      %v503 = vsel %vm498, %v488, 0
      %505 = vmatprep.subr.mxu0 0.0
      %506 = vmatpush1.msra.mxu0 0.0
      %507 = vmatprep.subr.mxu0 0.0
      %508 = vmatpush1.msra.mxu0 0.0
      %509 = vmatprep.subr.mxu0 0.0
      %510 = vmatpush1.msra.mxu0 0.0
      %511 = vmatprep.subr.mxu0 0.0
      %512 = vmatpush1.msra.mxu0 0.0
      %513 = vmatprep.subr.mxu0 0.0
      %514 = vmatpush1.msra.mxu0 0.0
      %515 = vmatprep.subr.mxu0 0.0
      %516 = vmatpush1.msra.mxu0 0.0
      %517 = vmatprep.subr.mxu0 0.0
      %518 = vmatpush1.msra.mxu0 0.0
      %519 = vmatprep.subr.mxu0 0.0
      %520 = vmatpush1.msra.mxu0 0.0
      %521 = vmatprep.subr.mxu0 0.0
      %522 = vmatpush1.msra.mxu0 0.0
      %523 = vmatprep.subr.mxu0 0.0
      %524 = vmatpush1.msra.mxu0 0.0
      %525 = vmatprep.subr.mxu0 0.0
      %526 = vmatpush1.msra.mxu0 0.0
      %527 = vmatprep.subr.mxu0 %v503
      %528 = vmatpush1.msra.mxu0 %v500
      %529 = vmatprep.subr.mxu0 %v486
      %530 = vmatpush1.msra.mxu0 %v485
      %531 = vmatprep.subr.mxu0 %v484
      %532 = vmatpush1.msra.mxu0 %v483
      %533 = vmatprep.subr.mxu0 %v482
      %534 = vmatpush1.msra.mxu0 %v481
      %535 = vmatprep.subr.mxu0 %v480
      %536 = vmatpush1.msra.mxu0 %v479
      %537 = vmatprep.subr.mxu0 0.0
      %538 = vmatpush2.msra.mxu0 0.0
      %539 = vmatprep.subr.mxu0 0.0
      %540 = vmatpush2.msra.mxu0 0.0
      %541 = vmatprep.subr.mxu0 0.0
      %542 = vmatpush2.msra.mxu0 0.0
      %543 = vmatprep.subr.mxu0 0.0
      %544 = vmatpush2.msra.mxu0 0.0
      %545 = vmatprep.subr.mxu0 0.0
      %546 = vmatpush2.msra.mxu0 0.0
      %547 = vmatprep.subr.mxu0 0.0
      %548 = vmatpush2.msra.mxu0 0.0
      %549 = vmatprep.subr.mxu0 0.0
      %550 = vmatpush2.msra.mxu0 0.0
      %551 = vmatprep.subr.mxu0 0.0
      %552 = vmatpush2.msra.mxu0 0.0
      %553 = vmatprep.subr.mxu0 0.0
      %554 = vmatpush2.msra.mxu0 0.0
      %555 = vmatprep.subr.mxu0 0.0
      %556 = vmatpush2.msra.mxu0 0.0
      %557 = vmatprep.subr.mxu0 0.0
      %558 = vmatpush2.msra.mxu0 0.0
      %559 = vmatprep.subr.mxu0 0.0
      %560 = vmatpush2.msra.mxu0 0.0
      %561 = vmatprep.subr.mxu0 0.0
      %562 = vmatpush2.msra.mxu0 0.0
      %563 = vmatprep.subr.mxu0 0.0
      %564 = vmatpush2.msra.mxu0 0.0
      %565 = vmatprep.subr.mxu0 0.0
      %566 = vmatpush2.msra.mxu0 0.0
      %567 = vmatprep.subr.mxu0 0.0
      %568 = vmatpush2.msra.mxu0 0.0
      %569 = vmatprep.mubr.f32.mxu0 0.0
      %570 = vmatmul.mubr.f32.gmra.mxu0 %v496
      %v571 = vpop.f32.mrf.mxu0
      %v572 = vadd.f32 %v492, %v571
      %v573 = vpop.f32.mrf.mxu0
      %v574 = vadd.f32 %v492, %v573
      %575 = vdwg.mxu0
      %v576 = vmax.f32 %v572, 0.0
      %v577 = vmax.f32 %v574, 0.0
      %578 = vrot.lane.b32.xlu0 %v576, 17
      %v579 = vpop.permute.xlu0 %578
      %580 = vrot.lane.b32.xlu0 %v577, 17
      %v581 = vpop.permute.xlu0 %580
      %v582 = vsel %vm266, %v579, %v581
      %v583 = vsel %vm266, %v581, %v579
      %v584 = vld [vmem:[%s5] ss:$8 sm:$0x3]
      %v586 = vlaneseq
      %v587 = vshrl.u32 %v586, 7
      %v588 = vsub.s32 0, %v587
      %v589 = vrot.slane %v584, %v588
      %v590 = vlaneseq
      %v591 = vshrl.u32 %v590, 7
      %v592 = vsub.s32 1, %v591
      %v593 = vrot.slane %v584, %v592
      %v596 = vmul.f32 %v583, %v589
      %v597 = vmul.f32 %v582, %v593
      %598 = vst [vmem:[#allocation3] sm:$0xf] %v596
      %599 = vst [vmem:[#allocation3 + $0x8] sm:$0xf] %v597
      %600 = vrot.lane.b32.xlu0 %v576, 16
      %v601 = vpop.permute.xlu0 %600
      %602 = vrot.lane.b32.xlu0 %v577, 16
      %v603 = vpop.permute.xlu0 %602
      %v604 = vsel %vm289, %v601, %v603
      %v605 = vsel %vm289, %v603, %v601
      %v606 = vld [vmem:[%s292] ss:$8 sm:$0x3]
      %v608 = vlaneseq
      %v609 = vshrl.u32 %v608, 7
      %v610 = vsub.s32 0, %v609
      %v611 = vrot.slane %v606, %v610
      %v612 = vlaneseq
      %v613 = vshrl.u32 %v612, 7
      %v614 = vsub.s32 1, %v613
      %v615 = vrot.slane %v606, %v614
      %v618 = vmul.f32 %v605, %v611
      %v619 = vmul.f32 %v604, %v615
      %v622 = vrot.slane %v618, 4
      %v623 = vrot.slane %v619, 4
      %626 = vst [vmem:[#allocation3] sm:$0xf0] %v622
      %627 = vst [vmem:[#allocation3 + $0x8] sm:$0xf0] %v623
      %628 = vrot.lane.b32.xlu0 %v576, 15
      %v629 = vpop.permute.xlu0 %628
      %630 = vrot.lane.b32.xlu0 %v577, 15
      %v631 = vpop.permute.xlu0 %630
      %v632 = vsel %vm319, %v629, %v631
      %v633 = vsel %vm319, %v631, %v629
      %v634 = vld [vmem:[%s322] ss:$8 sm:$0x3]
      %v636 = vlaneseq
      %v637 = vshrl.u32 %v636, 7
      %v638 = vsub.s32 0, %v637
      %v639 = vrot.slane %v634, %v638
      %v640 = vlaneseq
      %v641 = vshrl.u32 %v640, 7
      %v642 = vsub.s32 1, %v641
      %v643 = vrot.slane %v634, %v642
      %v646 = vmul.f32 %v633, %v639
      %v647 = vmul.f32 %v632, %v643
      %648 = vst [vmem:[#allocation3 + $0x10] sm:$0xf] %v646
      %649 = vst [vmem:[#allocation3 + $0x18] sm:$0xf] %v647
      %650 = vrot.lane.b32.xlu0 %v576, 1
      %v651 = vpop.permute.xlu0 %650
      %652 = vrot.lane.b32.xlu0 %v577, 1
      %v653 = vpop.permute.xlu0 %652
      %v654 = vsel %vm343, %v651, %v653
      %v655 = vsel %vm343, %v653, %v651
      %v656 = vld [vmem:[%s346] ss:$8 sm:$0x3]
      %v658 = vlaneseq
      %v659 = vshrl.u32 %v658, 7
      %v660 = vsub.s32 0, %v659
      %v661 = vrot.slane %v656, %v660
      %v662 = vlaneseq
      %v663 = vshrl.u32 %v662, 7
      %v664 = vsub.s32 1, %v663
      %v665 = vrot.slane %v656, %v664
      %v668 = vmul.f32 %v655, %v661
      %v669 = vmul.f32 %v654, %v665
      %v672 = vrot.slane %v668, 4
      %v673 = vrot.slane %v669, 4
      %676 = vst [vmem:[#allocation3 + $0x10] sm:$0xf0] %v672
      %677 = vst [vmem:[#allocation3 + $0x18] sm:$0xf0] %v673
      %678 = vst [vmem:[#allocation3 + $0x20] sm:$0xf] %v576
      %679 = vst [vmem:[#allocation3 + $0x28] sm:$0xf] %v577
      %680 = vrot.lane.b32.xlu0 %v576, 127
      %v681 = vpop.permute.xlu0 %680
      %682 = vrot.lane.b32.xlu0 %v577, 127
      %v683 = vpop.permute.xlu0 %682
      %v684 = vsel %vm375, %v681, %v683
      %v685 = vsel %vm375, %v683, %v681
      %v686 = vld [vmem:[%s378] ss:$8 sm:$0x3]
      %v688 = vlaneseq
      %v689 = vshrl.u32 %v688, 7
      %v690 = vsub.s32 0, %v689
      %v691 = vrot.slane %v686, %v690
      %v692 = vlaneseq
      %v693 = vshrl.u32 %v692, 7
      %v694 = vsub.s32 1, %v693
      %v695 = vrot.slane %v686, %v694
      %v698 = vmul.f32 %v684, %v691
      %v699 = vmul.f32 %v685, %v695
      %v702 = vrot.slane %v698, 4
      %v703 = vrot.slane %v699, 4
      %706 = vst [vmem:[#allocation3 + $0x20] sm:$0xf0] %v702
      %707 = vst [vmem:[#allocation3 + $0x28] sm:$0xf0] %v703
      %708 = vrot.lane.b32.xlu0 %v576, 113
      %v709 = vpop.permute.xlu0 %708
      %710 = vrot.lane.b32.xlu0 %v577, 113
      %v711 = vpop.permute.xlu0 %710
      %v712 = vsel %vm405, %v709, %v711
      %v713 = vsel %vm405, %v711, %v709
      %v714 = vld [vmem:[%s408] ss:$8 sm:$0x3]
      %v716 = vlaneseq
      %v717 = vshrl.u32 %v716, 7
      %v718 = vsub.s32 0, %v717
      %v719 = vrot.slane %v714, %v718
      %v720 = vlaneseq
      %v721 = vshrl.u32 %v720, 7
      %v722 = vsub.s32 1, %v721
      %v723 = vrot.slane %v714, %v722
      %v726 = vmul.f32 %v712, %v719
      %v727 = vmul.f32 %v713, %v723
      %728 = vst [vmem:[#allocation3 + $0x30] sm:$0xf] %v726
      %729 = vst [vmem:[#allocation3 + $0x38] sm:$0xf] %v727
      %730 = vrot.lane.b32.xlu0 %v576, 112
      %v731 = vpop.permute.xlu0 %730
      %732 = vrot.lane.b32.xlu0 %v577, 112
      %v733 = vpop.permute.xlu0 %732
      %v734 = vsel %vm429, %v731, %v733
      %v735 = vsel %vm429, %v733, %v731
      %v736 = vld [vmem:[%s432] ss:$8 sm:$0x3]
      %v738 = vlaneseq
      %v739 = vshrl.u32 %v738, 7
      %v740 = vsub.s32 0, %v739
      %v741 = vrot.slane %v736, %v740
      %v742 = vlaneseq
      %v743 = vshrl.u32 %v742, 7
      %v744 = vsub.s32 1, %v743
      %v745 = vrot.slane %v736, %v744
      %v748 = vmul.f32 %v734, %v741
      %v749 = vmul.f32 %v735, %v745
      %v752 = vrot.slane %v748, 4
      %v753 = vrot.slane %v749, 4
      %756 = vst [vmem:[#allocation3 + $0x30] sm:$0xf0] %v752
      %757 = vst [vmem:[#allocation3 + $0x38] sm:$0xf0] %v753
      %758 = vrot.lane.b32.xlu0 %v576, 111
      %v759 = vpop.permute.xlu0 %758
      %760 = vrot.lane.b32.xlu0 %v577, 111
      %v761 = vpop.permute.xlu0 %760
      %v762 = vsel %vm459, %v759, %v761
      %v763 = vsel %vm459, %v761, %v759
      %v764 = vld [vmem:[%s462] ss:$8 sm:$0x3]
      %v766 = vlaneseq
      %v767 = vshrl.u32 %v766, 7
      %v768 = vsub.s32 0, %v767
      %v769 = vrot.slane %v764, %v768
      %v770 = vlaneseq
      %v771 = vshrl.u32 %v770, 7
      %v772 = vsub.s32 1, %v771
      %v773 = vrot.slane %v764, %v772
      %v776 = vmul.f32 %v762, %v769
      %v777 = vmul.f32 %v763, %v773
      %778 = vst [vmem:[#allocation3 + $0x40] sm:$0xf] %v776
      %779 = vst [vmem:[#allocation3 + $0x48] sm:$0xf] %v777
      %v780 = vld [vmem:[#allocation3] sm:$0xff]
      %v781 = vld [vmem:[#allocation3 + $0x8] sm:$0xff]
      %v782 = vld [vmem:[#allocation3 + $0x10] sm:$0xff]
      %v783 = vld [vmem:[#allocation3 + $0x18] sm:$0xff]
      %v784 = vld [vmem:[#allocation3 + $0x20] sm:$0xff]
      %v785 = vld [vmem:[#allocation3 + $0x28] sm:$0xff]
      %v786 = vld [vmem:[#allocation3 + $0x30] sm:$0xff]
      %v787 = vld [vmem:[#allocation3 + $0x38] sm:$0xff]
      %v788 = vld [vmem:[#allocation3 + $0x40] sm:$0xf]
      %v789 = vld [vmem:[#allocation3 + $0x48] sm:$0xf]
      %791 = vset.pattern.permute.xlu0 0
      %792 = vperm.xlu0 %791, %v255
      %v793 = vpop.permute.xlu0 %792
      %v796 = vsel %vm494, %v254, 0
      %v799 = vsel %vm498, %v788, 0
      %v802 = vsel %vm498, %v789, 0
      %804 = vmatprep.subr.mxu0 0.0
      %805 = vmatpush1.msra.mxu0 0.0
      %806 = vmatprep.subr.mxu0 0.0
      %807 = vmatpush1.msra.mxu0 0.0
      %808 = vmatprep.subr.mxu0 0.0
      %809 = vmatpush1.msra.mxu0 0.0
      %810 = vmatprep.subr.mxu0 0.0
      %811 = vmatpush1.msra.mxu0 0.0
      %812 = vmatprep.subr.mxu0 0.0
      %813 = vmatpush1.msra.mxu0 0.0
      %814 = vmatprep.subr.mxu0 0.0
      %815 = vmatpush1.msra.mxu0 0.0
      %816 = vmatprep.subr.mxu0 0.0
      %817 = vmatpush1.msra.mxu0 0.0
      %818 = vmatprep.subr.mxu0 0.0
      %819 = vmatpush1.msra.mxu0 0.0
      %820 = vmatprep.subr.mxu0 0.0
      %821 = vmatpush1.msra.mxu0 0.0
      %822 = vmatprep.subr.mxu0 0.0
      %823 = vmatpush1.msra.mxu0 0.0
      %824 = vmatprep.subr.mxu0 0.0
      %825 = vmatpush1.msra.mxu0 0.0
      %826 = vmatprep.subr.mxu0 %v802
      %827 = vmatpush1.msra.mxu0 %v799
      %828 = vmatprep.subr.mxu0 %v787
      %829 = vmatpush1.msra.mxu0 %v786
      %830 = vmatprep.subr.mxu0 %v785
      %831 = vmatpush1.msra.mxu0 %v784
      %832 = vmatprep.subr.mxu0 %v783
      %833 = vmatpush1.msra.mxu0 %v782
      %834 = vmatprep.subr.mxu0 %v781
      %835 = vmatpush1.msra.mxu0 %v780
      %836 = vmatprep.subr.mxu0 0.0
      %837 = vmatpush2.msra.mxu0 0.0
      %838 = vmatprep.subr.mxu0 0.0
      %839 = vmatpush2.msra.mxu0 0.0
      %840 = vmatprep.subr.mxu0 0.0
      %841 = vmatpush2.msra.mxu0 0.0
      %842 = vmatprep.subr.mxu0 0.0
      %843 = vmatpush2.msra.mxu0 0.0
      %844 = vmatprep.subr.mxu0 0.0
      %845 = vmatpush2.msra.mxu0 0.0
      %846 = vmatprep.subr.mxu0 0.0
      %847 = vmatpush2.msra.mxu0 0.0
      %848 = vmatprep.subr.mxu0 0.0
      %849 = vmatpush2.msra.mxu0 0.0
      %850 = vmatprep.subr.mxu0 0.0
      %851 = vmatpush2.msra.mxu0 0.0
      %852 = vmatprep.subr.mxu0 0.0
      %853 = vmatpush2.msra.mxu0 0.0
      %854 = vmatprep.subr.mxu0 0.0
      %855 = vmatpush2.msra.mxu0 0.0
      %856 = vmatprep.subr.mxu0 0.0
      %857 = vmatpush2.msra.mxu0 0.0
      %858 = vmatprep.subr.mxu0 0.0
      %859 = vmatpush2.msra.mxu0 0.0
      %860 = vmatprep.subr.mxu0 0.0
      %861 = vmatpush2.msra.mxu0 0.0
      %862 = vmatprep.subr.mxu0 0.0
      %863 = vmatpush2.msra.mxu0 0.0
      %864 = vmatprep.subr.mxu0 0.0
      %865 = vmatpush2.msra.mxu0 0.0
      %866 = vmatprep.subr.mxu0 0.0
      %867 = vmatpush2.msra.mxu0 0.0
      %868 = vmatprep.mubr.f32.mxu0 0.0
      %869 = vmatmul.mubr.f32.gmra.mxu0 %v796
      %v870 = vpop.f32.mrf.mxu0
      %v871 = vadd.f32 %v793, %v870
      %v872 = vpop.f32.mrf.mxu0
      %v873 = vadd.f32 %v793, %v872
      %874 = vdwg.mxu0
      %v875 = vmax.f32 %v871, 0.0
      %v876 = vmax.f32 %v873, 0.0
      %v879 = vcombine.low %v875, %v876
      %881 = vst [vmem:[%s251] sm:$0xff] %v879
      %p882 = scmp.lt.s32.totalorder %s17, 1
      %s883 = scalar_select %p882, %s17, 1
      %s884 = smul.addr %s883, 2
      %s885 = smul.addr %s884, 4
      %s886 = scalar_lea.vmem %s6, %s885
      // Predicated region
      $region45: #{conv_relu_block_2d.1} parent=43 // pred_check
        %p887 = pneg %p166
      $region46: #{conv_relu_block_2d.1} parent=43 // pred_check_branch
        %889 = sbr.rel (%p887) target = $region48
      $region47: #{conv_relu_block_2d.1} parent=43 // pred_region
        _
      $region48: #{conv_relu_block_2d.1} parent=43 // pred_fallthru
        _
    $region44: #{conv_relu_block_2d.1} parent=5 // pred_fallthru
      _
    %p890 = scmp.le.s32.totalorder 2, %s12
    // Predicated region
    $region49: #{conv_relu_block_2d.1} parent=5 // pred_check
      %p891 = pneg %p890
    $region50: #{conv_relu_block_2d.1} parent=5 // pred_check_branch
      %893 = sbr.rel (%p891) target = $region52
    $region51: #{conv_relu_block_2d.1} parent=5 // pred_region
      %s894 = ssub.s32 %s12, 2
      // Predicated region
      $region53: #{conv_relu_block_2d.1} parent=51 // pred_check
        %p895 = pneg %p172
      $region54: #{conv_relu_block_2d.1} parent=51 // pred_check_branch
        %897 = sbr.rel (%p895) target = $region56
      $region55: #{conv_relu_block_2d.1} parent=51 // pred_region
        %p898 = scmp.lt.s32.totalorder %s18, 1
        %s899 = scalar_select %p898, %s18, 1
        %s900 = smul.addr %s899, 2
        %s901 = smul.addr %s900, 4
        %s902 = scalar_lea.vmem %s6, %s901
      $region56: #{conv_relu_block_2d.1} parent=51 // pred_fallthru
        _
    $region52: #{conv_relu_block_2d.1} parent=5 // pred_fallthru
      _
  $region6: #{conv_relu_block_2d.1} parent=0 // loop_footer
    %s16 = sadd.s32 1, %s12
  $region7: #{conv_relu_block_2d.1} parent=0 // loop_footer_branch
    %11 = sbr.rel target = $region3
  $region8: #{conv_relu_block_2d.1} parent=0 // loop_exit
    _

</llo_original>
